<compile_context>
chip_gen: v6e
topology: v6e:2x2x1
jax: 0.10.0
libtpu: 0.0.40
codegen_flags: <defaults>
</compile_context>

<pallas_src>
import jax
import jax.numpy as jnp
from jax.experimental import pallas as pl
from jax.experimental.pallas import tpu as pltpu


# ----------------------------- Pallas kernel -----------------------------

def _upconv_kernel(w_ref, x_ref, b_ref, o_ref):
    # (4*Cout, Cin) @ (Cin, tm) -> (4*Cout, tm); bf16 operands, f32 MXU accumulate.
    acc = jnp.dot(w_ref[...], x_ref[...], preferred_element_type=jnp.float32)
    o_ref[...] = acc + b_ref[...]          # per-row ((co,i,j) phase/channel) bias


def pallas_upconv_matmul(wT, x, b, *, tm=256):
    """wT: (P, Cin) bf16, x: (Cin, M) bf16, b: (P,) f32  ->  (P, M) f32.

    Output is lane-dense (M on the 128-lane axis, padded to a multiple of tm).
    """
    P, Cin = wT.shape
    Cin2, M = x.shape
    assert Cin == Cin2
    m_pad = ((M + tm - 1) // tm) * tm       # pad M so every tile is full / lane-dense
    if m_pad != M:
        x = jnp.pad(x, ((0, 0), (0, m_pad - M)))

    out = pl.pallas_call(
        _upconv_kernel,
        out_shape=jax.ShapeDtypeStruct((P, m_pad), jnp.float32),
        grid=(m_pad // tm,),
        in_specs=[
            pl.BlockSpec((P, Cin), lambda i: (0, 0)),   # weight: fully resident
            pl.BlockSpec((Cin, tm), lambda i: (0, i)),  # activation tile over M
            pl.BlockSpec((P, 1), lambda i: (0, 0)),     # bias column (broadcast over lanes)
        ],
        out_specs=pl.BlockSpec((P, tm), lambda i: (0, i)),
        compiler_params=pltpu.CompilerParams(dimension_semantics=("parallel",)),
    )(wT, x, b.reshape(P, 1).astype(jnp.float32))
    return out[:, :M]


# ----------------------------- forward -----------------------------

def up3d_forward(params, x1_ncdhw, x2_ncdhw):
    """Mirrors up3d.forward: returns ConvTranspose3d(x1) in NCDHW.

    x2 only feeds the discarded double_conv branch, which is elided (dead code).
    """
    del x2_ncdhw                              # consumed only by the dead branch
    N, Cin, D, H, W = x1_ncdhw.shape
    w = params["up_w"]                        # torch layout (Cin, Cout, 1, 2, 2)
    b = params["up_b"]                        # (Cout,)
    Cout = w.shape[1]

    # Weight as (4*Cout, Cin); row index = co*4 + i*2 + j.
    wT = w[:, :, 0, :, :].reshape(Cin, 4 * Cout).T
    b4 = jnp.repeat(b, 4)                     # bias per (co, i, j) output row

    # Activations as (Cin, M), M = N*D*H*W (n, d, h, w row-major).
    x = jnp.transpose(x1_ncdhw, (1, 0, 2, 3, 4)).reshape(Cin, N * D * H * W)

    y = pallas_upconv_matmul(
        wT.astype(jnp.bfloat16), x.astype(jnp.bfloat16), b4.astype(jnp.float32)
    )                                          # (4*Cout, M) f32

    # Single transpose straight to NCDHW:
    # (co, i, j, n, d, h, w) -> (n, co, d, h, i, w, j) -> (N, Cout, D, 2H, 2W)
    y = y.reshape(Cout, 2, 2, N, D, H, W)
    y = jnp.transpose(y, (3, 0, 4, 5, 1, 6, 2)).reshape(N, Cout, D, 2 * H, 2 * W)
    return y


# ----------------------------- deterministic params -----------------------------

def init_params(in_ch, out_ch, key):
    k0, k1 = jax.random.split(key, 2)
    return {
        # ConvTranspose3d weight layout: (in_ch, out_ch, kD=1, kH=2, kW=2)
        "up_w": 0.1 * jax.random.normal(k0, (in_ch, out_ch, 1, 2, 2), jnp.float32),
        "up_b": 0.1 * jax.random.normal(k1, (out_ch,), jnp.float32),
        # double_conv3d params are not materialized: that branch never affects
        # the module's return value (forward returns x1).
    }


if __name__ == "__main__":
    in_ch, out_ch = 8, 4
    N, D, H, W = 2, 4, 8, 8                   # x1 (low-res): (N, in_ch, D, H, W)
    key = jax.random.PRNGKey(0)
    k1, k2, kp = jax.random.split(key, 3)

    x1 = jax.random.normal(k1, (N, in_ch, D, H, W), jnp.float32)
    # x2 (skip connection): spatial 2x in H/W, channels = in_ch - out_ch (unused).
    x2 = jax.random.normal(k2, (N, in_ch - out_ch, D, 2 * H, 2 * W), jnp.float32)

    params = init_params(in_ch, out_ch, kp)

    fwd = jax.jit(up3d_forward)
    out = jax.block_until_ready(fwd(params, x1, x2))

    assert out.shape == (N, out_ch, D, 2 * H, 2 * W), out.shape
    assert out.dtype == jnp.float32

    # Reference ConvTranspose3d in plain f32 JAX (loose tol: kernel uses bf16 operands).
    ref = jnp.einsum("ncdhw,coij->nodhiwj", x1, params["up_w"][:, :, 0, :, :])
    ref = ref.reshape(N, out_ch, D, 2 * H, 2 * W) + params["up_b"][None, :, None, None, None]
    assert jnp.allclose(out, ref, rtol=2e-2, atol=2e-2), float(jnp.max(jnp.abs(out - ref)))

    print("KERNEL_OK")
</pallas_src>

<mosaic_0001>
module attributes {stable_mosaic.version = 11 : i64} {
  func.func @_upconv_kernel(%arg0: i32, %arg1: memref<16x8xbf16, #tpu.memory_space<vmem>>, %arg2: memref<8x256xbf16, #tpu.memory_space<vmem>>, %arg3: memref<16x1xf32, #tpu.memory_space<vmem>>, %arg4: memref<16x256xf32, #tpu.memory_space<vmem>>) attributes {dimension_semantics = [#tpu.dimension_semantics<parallel>], iteration_bounds = array<i64: 2>, scalar_prefetch = 0 : i64, scratch_operands = 0 : i64, tpu.core_type = #tpu.core_type<tc>, window_params = [{pipeline_mode = #tpu.pipeline_mode<synchronous>, transform_indices = @transform_0, window_bounds = array<i64: 16, 8>}, {transform_indices = @transform_1, window_bounds = array<i64: 8, 256>}, {pipeline_mode = #tpu.pipeline_mode<synchronous>, transform_indices = @transform_2, window_bounds = array<i64: 16, 1>}, {transform_indices = @transform_3, window_bounds = array<i64: 16, 256>}]} {
    %c0 = arith.constant 0 : index
    %c0_0 = arith.constant 0 : index
    %0 = vector.load %arg1[%c0, %c0_0] : memref<16x8xbf16, #tpu.memory_space<vmem>>, vector<16x8xbf16>
    %c0_1 = arith.constant 0 : index
    %c0_2 = arith.constant 0 : index
    %1 = vector.load %arg2[%c0_1, %c0_2] : memref<8x256xbf16, #tpu.memory_space<vmem>>, vector<8x256xbf16>
    %cst = arith.constant dense<0.000000e+00> : vector<16x256xf32>
    %2 = tpu.matmul %0, %1, %cst {dimension_numbers = #tpu.dot_dimension_numbers<[1], [0], [0], [1], [0, 0, 1, 1], [], []>} : vector<16x8xbf16>, vector<8x256xbf16>, vector<16x256xf32> -> vector<16x256xf32>
    %c0_3 = arith.constant 0 : index
    %c0_4 = arith.constant 0 : index
    %3 = vector.load %arg3[%c0_3, %c0_4] : memref<16x1xf32, #tpu.memory_space<vmem>>, vector<16x1xf32>
    %4 = vector.broadcast %3 : vector<16x1xf32> to vector<16x256xf32>
    %5 = arith.addf %2, %4 : vector<16x256xf32>
    %c0_5 = arith.constant 0 : index
    %c0_6 = arith.constant 0 : index
    %6 = vector.load %arg4[%c0_5, %c0_6] : memref<16x256xf32, #tpu.memory_space<vmem>>, vector<16x256xf32>
    tpu.vector_store %arg4[%c0_5, %c0_6], %5 {strides = array<i32>} : memref<16x256xf32, #tpu.memory_space<vmem>>, vector<16x256xf32>,
    return
  }
  func.func @transform_0(%arg0: i32) -> (i32, i32) {
    %c0_i32 = arith.constant 0 : i32
    %c0_i32_0 = arith.constant 0 : i32
    %c0_i32_1 = arith.constant 0 : i32
    return %c0_i32, %c0_i32_0 : i32, i32
  }
  func.func @transform_1(%arg0: i32) -> (i32, i32) {
    %c0_i32 = arith.constant 0 : i32
    %c0_i32_0 = arith.constant 0 : i32
    return %c0_i32, %arg0 : i32, i32
  }
  func.func @transform_2(%arg0: i32) -> (i32, i32) {
    %c0_i32 = arith.constant 0 : i32
    %c0_i32_0 = arith.constant 0 : i32
    %c0_i32_1 = arith.constant 0 : i32
    return %c0_i32, %c0_i32_0 : i32, i32
  }
  func.func @transform_3(%arg0: i32) -> (i32, i32) {
    %c0_i32 = arith.constant 0 : i32
    %c0_i32_0 = arith.constant 0 : i32
    return %c0_i32, %arg0 : i32, i32
  }
}

</mosaic_0001>

<llo_original>
// kernel: up3d_forward.1
$region0: #{up3d_forward.1}
  #allocation0 [shape = 'u32[]', space=smem, size = 0x4, offset = 0x4, fixed_abs, tag = 'smem constant byte address 0x4 - core index']
  #allocation1 [shape = 'u32[144,128]{1,0:T(1,128)}', space=vmem, size = 0x12000, scoped, tag = 'internal scratch']
  %s0 = inlined_call_operand.vmem [shape: bf16[16,8], index: 0, kind: input, shape index: {}]
  %s1 = inlined_call_operand.vmem [shape: bf16[8,512], index: 1, kind: input, shape index: {}]
  %s2 = inlined_call_operand.vmem [shape: f32[16,1], index: 2, kind: input, shape index: {}]
  %s3 = inlined_call_operand.vmem [shape: f32[16,512], index: 3, kind: output, shape index: {}]
  %s4 = sld [smem:[#allocation0]]
  $region64: #{up3d_forward.1} parent=0
    _
  %s6 = ssub.s32 1, %s4
  %s7 = scalar_select 0, %s6, %s4
  $region1: #{up3d_forward.1} parent=0
    #allocation2 [shape = 'u8[32768]{0}', space=vmem, size = 0x8000, scoped, tag = 'output window, operand 0']
    loop: start=0, step=1, limit=4
    $region2: #{up3d_forward.1} parent=1 // loop_pre_header
      _
    $region3: #{up3d_forward.1} parent=1 // loop_header
      %s9 = sphi 0, %s13
      %p10 = scmp.ge.s32.totalorder %s9, 4
      %s17 = sphi 0, %s17
      %s19 = sphi 0, %s17
      %s20 = sphi 0, %s19
      %s34 = sphi 0, %s20
      %s40 = sphi 0, %s42
      %s43 = sphi 0, %s40
      %s44 = sphi 0, %s43
      %s60 = sphi 0, %s44
      %s64 = sphi 0, %s64
      %s66 = sphi 0, %s64
      %s67 = sphi 0, %s66
      %s81 = sphi 0, %s67
      %s87 = sphi 0, %s89
      %s90 = sphi 0, %s87
      %s91 = sphi 0, %s90
      %s107 = sphi 0, %s91
    $region4: #{up3d_forward.1} parent=1 // loop_header_branch
      %12 = sbr.rel (%p10) target = $region8
    $region5: #{up3d_forward.1} parent=1 // loop_body
      %s14 = ssub.s32 %s9, 1
      %s15 = ssub.s32 %s9, 2
      %s16 = sadd.s32 %s9, 1
      %s18 = sadd.s32 %s17, 1
      %p21 = scmp.eq.s32.totalorder %s9, 1
      %p22 = scmp.ne.s32.totalorder %s17, %s19
      %p23 = scmp.eq.s32.totalorder %s9, 0
      %p24 = por %p22, %p23
      %p25 = scmp.ne.s32.totalorder %s17, %s19
      %p26 = scmp.eq.s32.totalorder %s14, 1
      %p27 = por %p25, %p26
      %p28 = scmp.ne.s32.totalorder %s19, %s20
      %p29 = scmp.eq.s32.totalorder %s14, 0
      %p30 = por %p28, %p29
      %p31 = scmp.ne.s32.totalorder %s19, %s20
      %p32 = scmp.eq.s32.totalorder %s15, 1
      %p33 = por %p31, %p32
      %p35 = scmp.ne.s32.totalorder %s20, %s34
      %p36 = scmp.eq.s32.totalorder %s15, 0
      %p37 = por %p35, %p36
      %s38 = ssub.s32 %s9, %s16
      %p39 = scmp.eq.s32.totalorder %s38, 0
      %s41 = sadd.s32 %s40, 1
      %s42 = scalar_select %p39, %s40, %s41
      %p45 = pneg %p39
      %p46 = scmp.eq.s32.totalorder %s9, 1
      %p47 = por %p45, %p46
      %p48 = scmp.ne.s32.totalorder %s40, %s43
      %p49 = scmp.eq.s32.totalorder %s9, 0
      %p50 = por %p48, %p49
      %p51 = scmp.ne.s32.totalorder %s40, %s43
      %p52 = scmp.eq.s32.totalorder %s14, 1
      %p53 = por %p51, %p52
      %p54 = scmp.ne.s32.totalorder %s43, %s44
      %p55 = scmp.eq.s32.totalorder %s14, 0
      %p56 = por %p54, %p55
      %p57 = scmp.ne.s32.totalorder %s43, %s44
      %p58 = scmp.eq.s32.totalorder %s15, 1
      %p59 = por %p57, %p58
      %p61 = scmp.ne.s32.totalorder %s44, %s60
      %p62 = scmp.eq.s32.totalorder %s15, 0
      %p63 = por %p61, %p62
      %s65 = sadd.s32 %s64, 1
      %p68 = scmp.eq.s32.totalorder %s9, 1
      %p69 = scmp.ne.s32.totalorder %s64, %s66
      %p70 = scmp.eq.s32.totalorder %s9, 0
      %p71 = por %p69, %p70
      %p72 = scmp.ne.s32.totalorder %s64, %s66
      %p73 = scmp.eq.s32.totalorder %s14, 1
      %p74 = por %p72, %p73
      %p75 = scmp.ne.s32.totalorder %s66, %s67
      %p76 = scmp.eq.s32.totalorder %s14, 0
      %p77 = por %p75, %p76
      %p78 = scmp.ne.s32.totalorder %s66, %s67
      %p79 = scmp.eq.s32.totalorder %s15, 1
      %p80 = por %p78, %p79
      %p82 = scmp.ne.s32.totalorder %s67, %s81
      %p83 = scmp.eq.s32.totalorder %s15, 0
      %p84 = por %p82, %p83
      %s85 = ssub.s32 %s9, %s16
      %p86 = scmp.eq.s32.totalorder %s85, 0
      %s88 = sadd.s32 %s87, 1
      %s89 = scalar_select %p86, %s87, %s88
      %p92 = pneg %p86
      %p93 = scmp.eq.s32.totalorder %s9, 1
      %p94 = por %p92, %p93
      %p95 = scmp.ne.s32.totalorder %s87, %s90
      %p96 = scmp.eq.s32.totalorder %s9, 0
      %p97 = por %p95, %p96
      %p98 = scmp.ne.s32.totalorder %s87, %s90
      %p99 = scmp.eq.s32.totalorder %s14, 1
      %p100 = por %p98, %p99
      %p101 = scmp.ne.s32.totalorder %s90, %s91
      %p102 = scmp.eq.s32.totalorder %s14, 0
      %p103 = por %p101, %p102
      %p104 = scmp.ne.s32.totalorder %s90, %s91
      %p105 = scmp.eq.s32.totalorder %s15, 1
      %p106 = por %p104, %p105
      %p108 = scmp.ne.s32.totalorder %s91, %s107
      %p109 = scmp.eq.s32.totalorder %s15, 0
      %p110 = por %p108, %p109
      %p111 = scmp.le.s32.totalorder 1, %s9
      %p112 = scmp.lt.s32.totalorder %s9, 3
      %p113 = pnand %p111, %p112
      %p114 = pneg %p113
      // Predicated region
      $region9: #{up3d_forward.1} parent=5 // pred_check
        _
      $region10: #{up3d_forward.1} parent=5 // pred_check_branch
        %116 = sbr.rel (%p113) target = $region12
      $region11: #{up3d_forward.1} parent=5 // pred_region
        %s117 = ssub.s32 %s9, 1
        // Predicated region
        $region13: #{up3d_forward.1} parent=11 // pred_check
          %p118 = pneg %p30
        $region14: #{up3d_forward.1} parent=11 // pred_check_branch
          %120 = sbr.rel (%p118) target = $region16
        $region15: #{up3d_forward.1} parent=11 // pred_region
          _
        $region16: #{up3d_forward.1} parent=11 // pred_fallthru
          _
        // Predicated region
        $region17: #{up3d_forward.1} parent=11 // pred_check
          %p121 = pneg %p77
        $region18: #{up3d_forward.1} parent=11 // pred_check_branch
          %123 = sbr.rel (%p121) target = $region20
        $region19: #{up3d_forward.1} parent=11 // pred_region
          _
        $region20: #{up3d_forward.1} parent=11 // pred_fallthru
          _
      $region12: #{up3d_forward.1} parent=5 // pred_fallthru
        _
      %p124 = scmp.lt.s32.totalorder %s9, 2
      // Predicated region
      $region21: #{up3d_forward.1} parent=5 // pred_check
        %p125 = pneg %p124
      $region22: #{up3d_forward.1} parent=5 // pred_check_branch
        %127 = sbr.rel (%p125) target = $region24
      $region23: #{up3d_forward.1} parent=5 // pred_region
        // Predicated region
        $region25: #{up3d_forward.1} parent=23 // pred_check
          %p128 = pneg %p50
        $region26: #{up3d_forward.1} parent=23 // pred_check_branch
          %130 = sbr.rel (%p128) target = $region28
        $region27: #{up3d_forward.1} parent=23 // pred_region
          %s131 = smul.u32 2, %s9
          %p132 = scmp.lt.s32.totalorder %s131, 3
          %s133 = scalar_select %p132, %s131, 3
          %s134 = smul.addr %s133, 4
          %s135 = scalar_lea.vmem %s1, %s134
          %s136 = smul.u32 2, %s9
        $region28: #{up3d_forward.1} parent=23 // pred_fallthru
          _
      $region24: #{up3d_forward.1} parent=5 // pred_fallthru
        _
      %p137 = scmp.le.s32.totalorder 1, %s9
      %p138 = scmp.lt.s32.totalorder %s9, 3
      %p139 = pnand %p137, %p138
      %p140 = pneg %p139
      // Predicated region
      $region29: #{up3d_forward.1} parent=5 // pred_check
        _
      $region30: #{up3d_forward.1} parent=5 // pred_check_branch
        %142 = sbr.rel (%p139) target = $region32
      $region31: #{up3d_forward.1} parent=5 // pred_region
        %s143 = ssub.s32 %s9, 1
        %p144 = pneg %p30
        %p145 = pneg %p27
        %s146 = smul.u32 2, %s14
        %p147 = scmp.lt.s32.totalorder %s146, 3
        %s148 = scalar_select %p147, %s146, 3
        %s149 = smul.addr %s148, 4
        %s150 = scalar_lea.vmem %s1, %s149
        %p151 = pneg %p56
        %p152 = pneg %p53
        %p153 = pneg %p77
        %p154 = pneg %p74
        %p155 = pneg %p103
        %p156 = pneg %p100
        %s157 = sand.u32 %s90, 1
        %s158 = sand.u32 %s90, 1
        %s159 = smul.addr %s158, 32
        %s160 = scalar_lea.vmem [#allocation2], %s159
        %s161 = smul.u32 2, %s14
        %p162 = scmp.lt.s32.totalorder %s161, 3
        %s163 = scalar_select %p162, %s161, 3
        %s164 = smul.addr %s163, 4
        %s165 = scalar_lea.vmem %s1, %s164
        %s166 = smul.u32 2, %s14
        %s167 = smul.u32 2, %s14
        %v169 = vld [vmem:[%s0] sm:$0xf]
        %v170 = vld [vmem:[%s0 + $0x4] sm:$0xf]
        %v171 = vld [vmem:[%s165] sm:$0xff]
        %v172 = vld [vmem:[%s2] sm:$0xff]
        %v173 = vld [vmem:[%s2 + $0x8] sm:$0xff]
        %175 = vset.pattern.permute.xlu0 0
        %176 = vperm.xlu0 %175, %v172
        %v177 = vpop.permute.xlu0 %176
        %180 = vset.pattern.permute.xlu0 0
        %181 = vperm.xlu0 %180, %v173
        %v182 = vpop.permute.xlu0 %181
        %v186 = vunpack.c.l.b16 %v169
        %v187 = vunpack.c.l.b16 %v170
        %v188 = vpack.c.b16 %v187, %v186
        %v190 = vunpack.c.l.b16 %v171
        %v191 = vunpack.c.h.b16 %v171
        %v192 = vpack.c.b16 %v190, %v190
        %v193 = vpack.c.b16 %v191, %v191
        %vm194 = vcmask 64512
        %v196 = vsel %vm194, %v188, 0
        %vm198 = vcmask 1043456
        %v200 = vsel %vm198, %v192, 0
        %v203 = vsel %vm198, %v193, 0
        %205 = vmatprep.subr.bf16.mxu0 0
        %206 = vmatpush1.bf16.msra.mxu0 0
        %207 = vmatprep.subr.bf16.mxu0 0
        %208 = vmatpush1.bf16.msra.mxu0 0
        %209 = vmatprep.subr.bf16.mxu0 0
        %210 = vmatpush1.bf16.msra.mxu0 0
        %211 = vmatprep.subr.bf16.mxu0 0
        %212 = vmatpush1.bf16.msra.mxu0 0
        %213 = vmatprep.subr.bf16.mxu0 0
        %214 = vmatpush1.bf16.msra.mxu0 0
        %215 = vmatprep.subr.bf16.mxu0 0
        %216 = vmatpush1.bf16.msra.mxu0 0
        %217 = vmatprep.subr.bf16.mxu0 0
        %218 = vmatpush1.bf16.msra.mxu0 0
        %219 = vmatprep.subr.bf16.mxu0 %v203
        %220 = vmatpush1.bf16.msra.mxu0 %v200
        %221 = vmatprep.subr.bf16.mxu0 0
        %222 = vmatpush2.bf16.msra.mxu0 0
        %223 = vmatprep.subr.bf16.mxu0 0
        %224 = vmatpush2.bf16.msra.mxu0 0
        %225 = vmatprep.subr.bf16.mxu0 0
        %226 = vmatpush2.bf16.msra.mxu0 0
        %227 = vmatprep.subr.bf16.mxu0 0
        %228 = vmatpush2.bf16.msra.mxu0 0
        %229 = vmatprep.subr.bf16.mxu0 0
        %230 = vmatpush2.bf16.msra.mxu0 0
        %231 = vmatprep.subr.bf16.mxu0 0
        %232 = vmatpush2.bf16.msra.mxu0 0
        %233 = vmatprep.subr.bf16.mxu0 0
        %234 = vmatpush2.bf16.msra.mxu0 0
        %235 = vmatprep.subr.bf16.mxu0 0
        %236 = vmatpush2.bf16.msra.mxu0 0
        %237 = vmatprep.mubr.bf16.mxu0 0
        %238 = vmatmul.mubr.bf16.gmra.mxu0 %v196
        %v239 = vpop.f32.mrf.mxu0
        %v240 = vadd.f32 %v177, %v239
        %v241 = vpop.f32.mrf.mxu0
        %v242 = vadd.f32 %v177, %v241
        %v243 = vpop.f32.mrf.mxu0
        %v244 = vadd.f32 %v182, %v243
        %v245 = vpop.f32.mrf.mxu0
        %v246 = vadd.f32 %v182, %v245
        %247 = vdwg.mxu0
        %248 = vst [vmem:[%s160] sm:$0xff] %v240
        %249 = vst [vmem:[%s160 + $0x8] sm:$0xff] %v242
        %250 = vst [vmem:[%s160 + $0x10] sm:$0xff] %v244
        %251 = vst [vmem:[%s160 + $0x18] sm:$0xff] %v246
        %s252 = sand.u32 %s90, 1
        %s253 = sand.u32 %s90, 1
        %s254 = smul.addr %s253, 32
        %s255 = scalar_lea.vmem [#allocation2], %s254
        // Predicated region
        $region33: #{up3d_forward.1} parent=31 // pred_check
          %p256 = pneg %p100
        $region34: #{up3d_forward.1} parent=31 // pred_check_branch
          %258 = sbr.rel (%p256) target = $region36
        $region35: #{up3d_forward.1} parent=31 // pred_region
          %s259 = smul.u32 2, %s14
          %s260 = smul.addr %s259, 8
          %s261 = scalar_lea.vmem %s3, %s260
          // Predicated region
          $region37: #{up3d_forward.1} parent=35 // pred_check
            _
          $region38: #{up3d_forward.1} parent=35 // pred_check_branch
            %263 = sbr.rel (0) target = $region40
          $region39: #{up3d_forward.1} parent=35 // pred_region
            // Predicated region
            $region41: #{up3d_forward.1} parent=39 // pred_check
              _
            $region42: #{up3d_forward.1} parent=39 // pred_check_branch
              %265 = sbr.rel (0) target = $region44
            $region43: #{up3d_forward.1} parent=39 // pred_region
              loop: start=0, step=1, limit=1
              $region45: #{up3d_forward.1} parent=43 // loop_pre_header
                _
              $region46: #{up3d_forward.1} parent=43 // loop_header
                %s267 = sphi 0, %s271
                %p268 = scmp.ge.s32.totalorder %s267, 1
                %s272 = sphi %s255, %s255
                %s273 = sphi %s261, %s261
              $region47: #{up3d_forward.1} parent=43 // loop_header_branch
                %270 = sbr.rel (%p268) target = $region51
              $region48: #{up3d_forward.1} parent=43 // loop_body
                %v274 = vld [vmem:[%s272] sm:$0xff]
                %275 = vst [vmem:[%s273] sm:$0xff] %v274
                %v276 = vld [vmem:[%s272 + $0x8] sm:$0xff]
                %277 = vst [vmem:[%s273 + $0x8] sm:$0xff] %v276
                %v278 = vld [vmem:[%s272 + $0x10] sm:$0xff]
                %279 = vst [vmem:[%s273 + $0x20] sm:$0xff] %v278
                %v280 = vld [vmem:[%s272 + $0x18] sm:$0xff]
                %281 = vst [vmem:[%s273 + $0x28] sm:$0xff] %v280
              $region49: #{up3d_forward.1} parent=43 // loop_footer
                %s271 = sadd.s32 1, %s267
              $region50: #{up3d_forward.1} parent=43 // loop_footer_branch
                %266 = sbr.rel target = $region46
              $region51: #{up3d_forward.1} parent=43 // loop_exit
                _
            $region44: #{up3d_forward.1} parent=39 // pred_fallthru
              _
            // Predicated region
            $region52: #{up3d_forward.1} parent=39 // pred_check
              _
            $region53: #{up3d_forward.1} parent=39 // pred_check_branch
              %283 = sbr.rel target = $region55
            $region54: #{up3d_forward.1} parent=39 // pred_region
              _
            $region55: #{up3d_forward.1} parent=39 // pred_fallthru
              _
          $region40: #{up3d_forward.1} parent=35 // pred_fallthru
            _
          %284 = vnop
        $region36: #{up3d_forward.1} parent=31 // pred_fallthru
          _
      $region32: #{up3d_forward.1} parent=5 // pred_fallthru
        _
      %p285 = scmp.le.s32.totalorder 2, %s9
      // Predicated region
      $region56: #{up3d_forward.1} parent=5 // pred_check
        %p286 = pneg %p285
      $region57: #{up3d_forward.1} parent=5 // pred_check_branch
        %288 = sbr.rel (%p286) target = $region59
      $region58: #{up3d_forward.1} parent=5 // pred_region
        %s289 = ssub.s32 %s9, 2
        // Predicated region
        $region60: #{up3d_forward.1} parent=58 // pred_check
          %p290 = pneg %p106
        $region61: #{up3d_forward.1} parent=58 // pred_check_branch
          %292 = sbr.rel (%p290) target = $region63
        $region62: #{up3d_forward.1} parent=58 // pred_region
          %s293 = sand.u32 %s91, 1
          %s294 = sand.u32 %s91, 1
          %s295 = smul.addr %s294, 32
          %s296 = scalar_lea.vmem [#allocation2], %s295
        $region63: #{up3d_forward.1} parent=58 // pred_fallthru
          _
      $region59: #{up3d_forward.1} parent=5 // pred_fallthru
        _
    $region6: #{up3d_forward.1} parent=1 // loop_footer
      %s13 = sadd.s32 1, %s9
    $region7: #{up3d_forward.1} parent=1 // loop_footer_branch
      %8 = sbr.rel target = $region3
    $region8: #{up3d_forward.1} parent=1 // loop_exit
      _

</llo_original>
